<compile_context>
chip_gen: v6e
topology: v6e:2x2x1
jax: 0.10.0
libtpu: 0.0.40
codegen_flags: <defaults>
</compile_context>

<pallas_src>
import functools

import jax
import jax.numpy as jnp
import numpy as np
from jax import lax
from jax.experimental import pallas as pl
from jax.experimental.pallas import tpu as pltpu


def _l2ball_project_kernel(x_ref, out_ref, *, radius, total_rows, mask_rows):
    """Project each row of the (block_rows, N) tile onto the L2 ball."""
    x = x_ref[...]
    xf = x.astype(jnp.float32)
    r = jnp.float32(radius)
    r2 = jnp.float32(radius) * jnp.float32(radius)

    # Row-wise squared L2 norm in f32 (lane-axis reduce -> XLU).
    sq_norm = jnp.sum(xf * xf, axis=-1, keepdims=True)            # (bm, 1)
    is_outside = sq_norm > r2
    # rsqrt goes to the EUP (own VLIW slot); the where-guard keeps the
    # sq_norm == 0 case safe: norm 0 <= radius means "inside", scale = 1.
    scale = jnp.where(is_outside, r * lax.rsqrt(sq_norm), jnp.float32(1.0))

    if x.dtype == jnp.float32:
        y = xf * scale
    else:
        # Keep the multiply in the native (packed) dtype; no persistent f32
        # copy of the tile.  (On v5e the compiler promotes as needed.)
        y = x * scale.astype(x.dtype)

    if mask_rows:
        # Last block is ragged: give the padded rows fully defined contents.
        bm = x.shape[0]
        row = (pl.program_id(0) * bm
               + lax.broadcasted_iota(jnp.int32, (bm, 1), 0))
        y = jnp.where(row < total_rows, y, jnp.zeros_like(y))

    out_ref[...] = y.astype(out_ref.dtype)


def _target_block_bytes():
    """Per-block byte target, generation aware (bigger on high-BW v7x)."""
    target = 4 << 20
    try:
        info = pltpu.get_tpu_info()
        vmem = getattr(info, "vmem_capacity_bytes", None)
        if vmem is not None and vmem <= (64 << 20):
            # v7x-class: 3.2 TB/s HBM and 64 MiB VMEM per TC.  8 MiB blocks
            # (4 double-buffered slabs = 32 MiB) amortize the ~0.35 us/step
            # fixed overhead to <10% of the roofline.
            target = 8 << 20
    except Exception:
        pass
    return target


def _pick_block_rows(B, N, itemsize, target_bytes):
    """Row tile: sublane aligned, ~target_bytes slabs, >= 4 grid steps."""
    # Sublane packing: 8 rows for f32, 16 for bf16, 32 for int8/fp8.
    row_align = 8 * max(1, 4 // itemsize)
    bytes_per_row = max(1, N * itemsize)

    rows = max(row_align,
               (target_bytes // bytes_per_row) // row_align * row_align)
    b_ceil = pl.cdiv(B, row_align) * row_align
    rows = min(rows, b_ceil)

    # Aim for >= 4 grid steps (>= 2 per v7x TensorCore) so each core keeps
    # DMA/compute overlap, but never shrink a block below ~1 MiB.
    min_rows = max(row_align,
                   ((1 << 20) // bytes_per_row) // row_align * row_align)
    steps_cap_rows = max(row_align,
                         pl.cdiv(pl.cdiv(b_ceil, 4), row_align) * row_align)
    rows = min(rows, max(min_rows, steps_cap_rows))
    rows = min(rows, b_ceil)
    return max(row_align, rows)


def euclidean_projection(x, radius=1.0, donate=False):
    """Pallas-backed forward of EuclideanProjection (L2-ball method).

    x      : (..., N) array; projection reduces over the last (lane) dim.
    radius : python float (matches `radius.item()` in the torch code).
             TODO(synk): if radius varies at runtime (learnable / per-batch),
             pass it through SMEM (PrefetchScalarGridSpec) to avoid a Mosaic
             recompile per distinct value.
    donate : if True, alias the output onto the input HBM buffer.
    """
    orig_shape = x.shape
    if x.ndim != 2:
        x = x.reshape(-1, orig_shape[-1])
    B, N = x.shape

    itemsize = jnp.dtype(x.dtype).itemsize
    target_bytes = _target_block_bytes()
    block_rows = _pick_block_rows(B, N, itemsize, target_bytes)
    grid = pl.cdiv(B, block_rows)

    block_bytes = block_rows * N * itemsize
    vmem_limit = int(min(48 << 20, max(32 << 20, 4 * block_bytes + (8 << 20))))

    kernel = functools.partial(
        _l2ball_project_kernel,
        radius=float(radius),
        total_rows=B,
        mask_rows=(B % block_rows != 0),
    )
    cost = pl.CostEstimate(
        flops=3 * B * N,
        transcendentals=B,
        bytes_accessed=2 * B * N * itemsize,
    )

    # TODO(synk): if N is so large that even one aligned row-tile exceeds the
    # VMEM budget, add a second "arbitrary" grid axis over N with a (bm, 1)
    # sq_norm accumulator; whole-N blocks avoid a second HBM read so they
    # stay the default here.
    out = pl.pallas_call(
        kernel,
        out_shape=jax.ShapeDtypeStruct((B, N), x.dtype),
        grid=(grid,),
        in_specs=[pl.BlockSpec((block_rows, N), lambda i: (i, 0))],
        out_specs=pl.BlockSpec((block_rows, N), lambda i: (i, 0)),
        compiler_params=pltpu.CompilerParams(
            dimension_semantics=("parallel",),
            vmem_limit_bytes=vmem_limit,
        ),
        cost_estimate=cost,
        input_output_aliases={0: 0} if donate else {},
    )(x)

    return out.reshape(orig_shape)


def _reference(x, radius):
    xf = x.astype(jnp.float32)
    norm = jnp.linalg.norm(xf, axis=-1, keepdims=True)
    is_outside = norm > radius
    proj = jnp.where(is_outside, radius * xf / norm, xf)
    return proj.astype(x.dtype)


if __name__ == "__main__":
    radius = 1.0

    # Case 1: batch divisible by the sublane tile, rows inside / outside ball.
    B, N = 16, 256
    x = jax.random.normal(jax.random.PRNGKey(0), (B, N), dtype=jnp.float32)
    x = x * jnp.linspace(0.01, 2.0, B)[:, None]
    out = jax.block_until_ready(euclidean_projection(x, radius))
    np.testing.assert_allclose(np.asarray(out),
                               np.asarray(_reference(x, radius)),
                               rtol=1e-5, atol=1e-5)

    # Case 2: ragged batch (exercises the edge block + in-kernel row mask).
    B2, N2 = 10, 128
    x2 = jax.random.normal(jax.random.PRNGKey(1), (B2, N2), dtype=jnp.float32)
    x2 = x2 * jnp.linspace(0.05, 3.0, B2)[:, None]
    out2 = jax.block_until_ready(euclidean_projection(x2, radius))
    np.testing.assert_allclose(np.asarray(out2),
                               np.asarray(_reference(x2, radius)),
                               rtol=1e-5, atol=1e-5)

    # Case 3: bf16 input (native-dtype multiply path, f32 norm accumulation).
    x3 = (jax.random.normal(jax.random.PRNGKey(2), (12, 128), dtype=jnp.float32)
          * jnp.linspace(0.1, 2.5, 12)[:, None]).astype(jnp.bfloat16)
    out3 = jax.block_until_ready(euclidean_projection(x3, radius))
    np.testing.assert_allclose(np.asarray(out3.astype(jnp.float32)),
                               np.asarray(_reference(x3, radius).astype(jnp.float32)),
                               rtol=2e-2, atol=2e-2)

    # TODO(synk): backward (ctx.method.gradient) is a custom VJP in the torch
    # module; only the forward projection is implemented here.
    print("KERNEL_OK")
</pallas_src>

<mosaic_0001>
module attributes {stable_mosaic.version = 11 : i64} {
  func.func @_l2ball_project_kernel(%arg0: i32, %arg1: memref<16x256xf32, #tpu.memory_space<vmem>>, %arg2: memref<16x256xf32, #tpu.memory_space<vmem>>) attributes {dimension_semantics = [#tpu.dimension_semantics<parallel>], iteration_bounds = array<i64: 1>, scalar_prefetch = 0 : i64, scratch_operands = 0 : i64, tpu.core_type = #tpu.core_type<tc>, window_params = [{transform_indices = @transform_0, window_bounds = array<i64: 16, 256>}, {transform_indices = @transform_1, window_bounds = array<i64: 16, 256>}]} {
    %c0 = arith.constant 0 : index
    %c0_0 = arith.constant 0 : index
    %0 = vector.load %arg1[%c0, %c0_0] : memref<16x256xf32, #tpu.memory_space<vmem>>, vector<16x256xf32>
    %cst = arith.constant 1.000000e+00 : f32
    %cst_1 = arith.constant 1.000000e+00 : f32
    %1 = arith.mulf %cst, %cst_1 : f32
    %2 = arith.mulf %0, %0 : vector<16x256xf32>
    %cst_2 = arith.constant dense<0.000000e+00> : vector<16xf32>
    %3 = vector.multi_reduction <add>, %2, %cst_2 [1] : vector<16x256xf32> to vector<16xf32>
    %4 = vector.shape_cast %3 : vector<16xf32> to vector<16x1xf32>
    %5 = vector.broadcast %1 : f32 to vector<16x1xf32>
    %6 = arith.cmpf ogt, %4, %5 : vector<16x1xf32>
    %7 = math.rsqrt %4 : vector<16x1xf32>
    %cst_3 = arith.constant 1.000000e+00 : f32
    %8 = vector.broadcast %cst_3 : f32 to vector<16x1xf32>
    %9 = arith.mulf %8, %7 : vector<16x1xf32>
    %cst_4 = arith.constant 1.000000e+00 : f32
    %10 = vector.broadcast %cst_4 : f32 to vector<16x1xf32>
    %11 = arith.select %6, %9, %10 : vector<16x1xi1>, vector<16x1xf32>
    %12 = vector.broadcast %11 : vector<16x1xf32> to vector<16x256xf32>
    %13 = arith.mulf %0, %12 : vector<16x256xf32>
    %c0_5 = arith.constant 0 : index
    %c0_6 = arith.constant 0 : index
    %14 = vector.load %arg2[%c0_5, %c0_6] : memref<16x256xf32, #tpu.memory_space<vmem>>, vector<16x256xf32>
    tpu.vector_store %arg2[%c0_5, %c0_6], %13 {strides = array<i32>} : memref<16x256xf32, #tpu.memory_space<vmem>>, vector<16x256xf32>,
    return
  }
  func.func @transform_0(%arg0: i32) -> (i32, i32) {
    %c0_i32 = arith.constant 0 : i32
    %c0_i32_0 = arith.constant 0 : i32
    return %arg0, %c0_i32 : i32, i32
  }
  func.func @transform_1(%arg0: i32) -> (i32, i32) {
    %c0_i32 = arith.constant 0 : i32
    %c0_i32_0 = arith.constant 0 : i32
    return %arg0, %c0_i32 : i32, i32
  }
}

</mosaic_0001>

<llo_original>
// kernel: tpu_custom_call.1
$region0: #{tpu_custom_call.1}
  #allocation0 [shape = 'u32[]', space=smem, size = 0x4, offset = 0x4, fixed_abs, tag = 'smem constant byte address 0x4 - core index']
  #allocation1 [shape = 'u32[144,128]{1,0:T(1,128)}', space=vmem, size = 0x12000, scoped, tag = 'internal scratch']
  %s0 = inlined_call_operand.hbm [shape: f32[16,256], index: 0, kind: input, shape index: {}]
  %s1 = inlined_call_operand.hbm [shape: f32[16,256], index: 1, kind: output, shape index: {}]
  %s2 = sld [smem:[#allocation0]]
  $region18: #{tpu_custom_call.1} parent=0
    _
  %s4 = ssub.s32 1, %s2
  %s5 = scalar_select 0, %s4, %s2
  $region1: #{tpu_custom_call.1} parent=0
    #allocation2 [shape = 'u8[16384]{0}', space=vmem, size = 0x4000, scoped, tag = 'input window, operand 0, single buffered']
    #allocation3 [shape = 's32[1]{0}', space=sflag, size = 0x4, scoped, tag = 'scoped memory for tpu_custom_call.1']
    #allocation4 [shape = 's32[1]{0}', space=sflag, size = 0x4, scoped, tag = 'scoped memory for tpu_custom_call.1']
    #allocation5 [shape = 'u8[16384]{0}', space=vmem, size = 0x4000, scoped, tag = 'output window, operand 0, single buffered']
    %6 = vsyncpa [#allocation3], 0
    %7 = vsyncpa [#allocation4], 0
    // Predicated region
    $region2: #{tpu_custom_call.1} parent=1 // pred_check
      _
    $region3: #{tpu_custom_call.1} parent=1 // pred_check_branch
      %9 = sbr.rel (0) target = $region5
    $region4: #{tpu_custom_call.1} parent=1 // pred_region
      %s11 = ssub.s32 512, 512
      %12 = vsyncadd [#allocation3], %s11
      %s13 = sshll.u32 [#allocation2], 4
      %s14 = int_to_ptr.vmem [resolvable:$true] %s13
      %19 = dma.hbm_to_vmem [thread:$0]  %s0, 512, %s14, [#allocation3], 256, 256, 16
    $region5: #{tpu_custom_call.1} parent=1 // pred_fallthru
      _
    // Predicated region
    $region6: #{tpu_custom_call.1} parent=1 // pred_check
      _
    $region7: #{tpu_custom_call.1} parent=1 // pred_check_branch
      %21 = sbr.rel (0) target = $region9
    $region8: #{tpu_custom_call.1} parent=1 // pred_region
      %22 = dma.done [#allocation3], 512
    $region9: #{tpu_custom_call.1} parent=1 // pred_fallthru
      _
    %v23 = vld [vmem:[#allocation2] sm:$0xff]
    %v24 = vld [vmem:[#allocation2 + $0x8] sm:$0xff]
    %v25 = vld [vmem:[#allocation2 + $0x10] sm:$0xff]
    %v26 = vld [vmem:[#allocation2 + $0x18] sm:$0xff]
    %v27 = vmul.f32 %v23, %v23
    %v28 = vmul.f32 %v24, %v24
    %v29 = vmul.f32 %v25, %v25
    %v30 = vmul.f32 %v26, %v26
    %v31 = vadd.f32 %v27, %v28
    %32 = vadd.xlane.f32.xlu0 %v31
    %v33 = vpop.xlane.xlu0 %32
    %v34 = vadd.f32 %v29, %v30
    %35 = vadd.xlane.f32.xlu0 %v34
    %v36 = vpop.xlane.xlu0 %35
    %vm37 = vcmp.gt.f32.partialorder %v33, 1.0
    %vm38 = vcmp.gt.f32.partialorder %v36, 1.0
    %v39 = vrsqrt.pop %v33
    %v40 = vrsqrt.pop %v36
    %v41 = vsel %vm37, %v39, 1.0
    %v42 = vsel %vm38, %v40, 1.0
    %v43 = vmul.f32 %v23, %v41
    %v44 = vmul.f32 %v24, %v41
    %v45 = vmul.f32 %v25, %v42
    %v46 = vmul.f32 %v26, %v42
    %47 = vst [vmem:[#allocation5] sm:$0xff] %v43
    %48 = vst [vmem:[#allocation5 + $0x8] sm:$0xff] %v44
    %49 = vst [vmem:[#allocation5 + $0x10] sm:$0xff] %v45
    %50 = vst [vmem:[#allocation5 + $0x18] sm:$0xff] %v46
    // Predicated region
    $region10: #{tpu_custom_call.1} parent=1 // pred_check
      _
    $region11: #{tpu_custom_call.1} parent=1 // pred_check_branch
      %52 = sbr.rel (0) target = $region13
    $region12: #{tpu_custom_call.1} parent=1 // pred_region
      %s54 = ssub.s32 512, 512
      %55 = vsyncadd [#allocation4], %s54
      %s56 = sshll.u32 [#allocation5], 4
      %s57 = int_to_ptr.vmem [resolvable:$true] %s56
      %62 = dma.vmem_to_hbm [thread:$0]  %s57, 512, %s1, [#allocation4], 256, 256, 16
    $region13: #{tpu_custom_call.1} parent=1 // pred_fallthru
      _
    // Predicated region
    $region14: #{tpu_custom_call.1} parent=1 // pred_check
      _
    $region15: #{tpu_custom_call.1} parent=1 // pred_check_branch
      %64 = sbr.rel (0) target = $region17
    $region16: #{tpu_custom_call.1} parent=1 // pred_region
      %65 = dma.done [#allocation4], 512
    $region17: #{tpu_custom_call.1} parent=1 // pred_fallthru
      _
    %66 = vsyncpa [#allocation3], 1
    %67 = vsyncpa [#allocation4], 1

</llo_original>
